<compile_context>
chip_gen: v7x
topology: tpu7x:2x2x1
jax: 0.10.0
libtpu: 0.0.40
codegen_flags: <defaults>
</compile_context>

<pallas_src>
import functools

import jax
import jax.numpy as jnp
from jax.experimental import pallas as pl
from jax.experimental.pallas import tpu as pltpu


def _lastconf_kernel(x_ref, psum_ref, *, batch, needs_mask):
    """One batch tile: partial sum of -log_softmax(x, 1)[:, -1] over its rows."""
    x = x_ref[...].astype(jnp.float32)          # (TB, C), upcast bf16 -> f32
    tb, c = x.shape

    # Numerically stable logsumexp over the class (lane) axis.
    m = jnp.max(x, axis=1, keepdims=True)                                # (TB, 1)
    lse = m + jnp.log(jnp.sum(jnp.exp(x - m), axis=1, keepdims=True))    # (TB, 1)
    # -log_softmax(x)[:, -1] = logsumexp(x, 1) - x[:, -1]
    loss = lse - x[:, c - 1:c]                                           # (TB, 1)

    if needs_mask:  # static: only traced when B % TB != 0
        i = pl.program_id(0)
        row = i * tb + jax.lax.broadcasted_iota(jnp.int32, (tb, 1), 0)
        loss = jnp.where(row < batch, loss, 0.0)   # select kills NaN/inf garbage

    psum_ref[...] = jnp.sum(loss).reshape(1, 1, 1)


def _vmem_budget_bytes():
    """Generation-aware scoped-VMEM budget with headroom for Mosaic scratch."""
    try:
        cap = int(pltpu.get_tpu_info().vmem_capacity_bytes)
    except Exception:
        cap = 64 * 1024 * 1024
    if cap <= 64 * 1024 * 1024:      # v7x-class: 64 MiB physical per TC
        return 48 * 1024 * 1024
    return 96 * 1024 * 1024          # v5e / v6e: 128 MiB physical


def _choose_batch_tile(b, c, itemsize, vmem_budget):
    """Pick TB (multiple of 8, or == B) from the VMEM byte budget.

    Live bytes per tile row: 2x double-buffered input + ~3x f32 intermediates
    (upcast copy, exp temp, ...).  Also target ~8 MiB of input per buffer —
    comfortably past the measured ~85% HBM-roofline tile size — so long grids
    do not pay the ~0.35 us/step overhead more often than needed.
    """
    per_row = 2 * c * itemsize + 3 * c * 4
    slack = 2 * 1024 * 1024
    tb_fit = max(1, (vmem_budget - slack) // per_row)
    tb_target = max(1, (8 * 1024 * 1024) // (c * itemsize))
    tb = min(tb_fit, tb_target, b)
    if tb >= b:
        return b                      # block == full dim (valid layout)
    if b <= 8:
        return b
    return max(8, (tb // 8) * 8)      # multiple of 8 sublanes


def lastconf_loss(x, reduction="mean", *, _max_rows_per_tile=None):
    """x: (batch, num_classes) floats -> mean of -log_softmax(x, 1)[:, -1]."""
    assert reduction == "mean", "only the default 'mean' reduction is kernelized"
    b, c = x.shape
    itemsize = jnp.dtype(x.dtype).itemsize

    budget = _vmem_budget_bytes()
    tb = _choose_batch_tile(b, c, itemsize, budget)
    if _max_rows_per_tile is not None:           # test hook: force multi-tile grids
        tb = min(tb, _max_rows_per_tile)
        if tb < b and b > 8:
            tb = max(8, (tb // 8) * 8)

    ntiles = pl.cdiv(b, tb)
    needs_mask = (b % tb) != 0

    kernel = functools.partial(_lastconf_kernel, batch=b, needs_mask=needs_mask)

    psums = pl.pallas_call(
        kernel,
        out_shape=jax.ShapeDtypeStruct((ntiles, 1, 1), jnp.float32),
        grid_spec=pltpu.PrefetchScalarGridSpec(
            num_scalar_prefetch=0,
            grid=(ntiles,),
            in_specs=[pl.BlockSpec((tb, c), lambda i: (i, 0))],
            # One partial sum per tile; last two block dims equal the full dims.
            out_specs=pl.BlockSpec((1, 1, 1), lambda i: (i, 0, 0)),
        ),
        compiler_params=pltpu.CompilerParams(
            # Independent tiles -> grid axis can shard across TCs on v7x.
            dimension_semantics=("parallel",),
            vmem_limit_bytes=int(budget),
        ),
        cost_estimate=pl.CostEstimate(
            flops=5 * b * c,
            transcendentals=b * c,
            bytes_accessed=b * c * itemsize + ntiles * 4,
        ),
    )(x)

    # Tiny finalize in the surrounding XLA graph: sum ntiles partials, scale by 1/B.
    return jnp.sum(psums) * (1.0 / b)


def lastconf_ref(x):
    # Pure-JAX reference for correctness check.
    logp = jax.nn.log_softmax(x.astype(jnp.float32), axis=1)
    return jnp.mean(-logp[:, -1])


if __name__ == "__main__":
    key = jax.random.PRNGKey(0)

    # Case 1: f32 logits, single tile.
    b1, c1 = 16, 32
    x1 = jax.random.normal(key, (b1, c1), dtype=jnp.float32)
    got1 = jax.block_until_ready(lastconf_loss(x1))
    want1 = jax.block_until_ready(lastconf_ref(x1))
    assert jnp.allclose(got1, want1, atol=1e-5, rtol=1e-5), (got1, want1)

    # Case 2: bf16 logits (in-kernel upcast), batch not a multiple of 8.
    b2, c2 = 13, 128
    x2 = jax.random.normal(jax.random.PRNGKey(1), (b2, c2), dtype=jnp.float32)
    x2 = x2.astype(jnp.bfloat16)
    got2 = jax.block_until_ready(lastconf_loss(x2))
    want2 = jax.block_until_ready(lastconf_ref(x2))
    assert jnp.allclose(got2, want2, atol=1e-3, rtol=1e-3), (got2, want2)

    # Case 3: force a multi-tile "parallel" grid with a ragged last tile
    # (exercises per-tile partial sums + the padded-row mask).
    b3, c3 = 37, 64
    x3 = jax.random.normal(jax.random.PRNGKey(2), (b3, c3), dtype=jnp.float32)
    got3 = jax.block_until_ready(lastconf_loss(x3, _max_rows_per_tile=16))
    want3 = jax.block_until_ready(lastconf_ref(x3))
    assert jnp.allclose(got3, want3, atol=1e-5, rtol=1e-5), (got3, want3)

    print("KERNEL_OK")
</pallas_src>

<mosaic_0001>
module attributes {stable_mosaic.version = 11 : i64} {
  func.func @_lastconf_kernel(%arg0: i32, %arg1: memref<16x32xf32, #tpu.memory_space<vmem>>, %arg2: memref<1x1x1xf32, #tpu.memory_space<vmem>>) attributes {dimension_semantics = [#tpu.dimension_semantics<parallel>], iteration_bounds = array<i64: 1>, scalar_prefetch = 0 : i64, scratch_operands = 0 : i64, tpu.core_type = #tpu.core_type<tc>, window_params = [{transform_indices = @transform_0, window_bounds = array<i64: 16, 32>}, {transform_indices = @transform_1, window_bounds = array<i64: 1, 1, 1>}]} {
    %c0 = arith.constant 0 : index
    %c0_0 = arith.constant 0 : index
    %0 = vector.load %arg1[%c0, %c0_0] : memref<16x32xf32, #tpu.memory_space<vmem>>, vector<16x32xf32>
    %cst = arith.constant dense<0xFF800000> : vector<16xf32>
    %1 = vector.multi_reduction <maximumf>, %0, %cst [1] : vector<16x32xf32> to vector<16xf32>
    %2 = vector.shape_cast %1 : vector<16xf32> to vector<16x1xf32>
    %3 = vector.broadcast %2 : vector<16x1xf32> to vector<16x32xf32>
    %4 = arith.subf %0, %3 : vector<16x32xf32>
    %5 = math.exp %4 : vector<16x32xf32>
    %cst_1 = arith.constant dense<0.000000e+00> : vector<16xf32>
    %6 = vector.multi_reduction <add>, %5, %cst_1 [1] : vector<16x32xf32> to vector<16xf32>
    %7 = vector.shape_cast %6 : vector<16xf32> to vector<16x1xf32>
    %8 = math.log %7 : vector<16x1xf32>
    %9 = arith.addf %2, %8 : vector<16x1xf32>
    %10 = vector.extract_strided_slice %0 {offsets = [0, 31], sizes = [16, 1], strides = [1, 1]} : vector<16x32xf32> to vector<16x1xf32>
    %11 = arith.subf %9, %10 : vector<16x1xf32>
    %12 = vector.shape_cast %11 : vector<16x1xf32> to vector<1x16x1xf32>
    %cst_2 = arith.constant dense<0.000000e+00> : vector<1xf32>
    %13 = vector.multi_reduction <add>, %12, %cst_2 [1, 2] : vector<1x16x1xf32> to vector<1xf32>
    %14 = vector.shape_cast %13 : vector<1xf32> to vector<1x1x1xf32>
    %15 = vector.extract %14[0, 0, 0] : f32 from vector<1x1x1xf32>
    %16 = vector.broadcast %15 : f32 to vector<1x1x1xf32>
    %c0_3 = arith.constant 0 : index
    %c0_4 = arith.constant 0 : index
    %c0_5 = arith.constant 0 : index
    %17 = vector.load %arg2[%c0_3, %c0_4, %c0_5] : memref<1x1x1xf32, #tpu.memory_space<vmem>>, vector<1x1x1xf32>
    tpu.vector_store %arg2[%c0_3, %c0_4, %c0_5], %16 {strides = array<i32>} : memref<1x1x1xf32, #tpu.memory_space<vmem>>, vector<1x1x1xf32>,
    return
  }
  func.func @transform_0(%arg0: i32) -> (i32, i32) {
    %c0_i32 = arith.constant 0 : i32
    %c0_i32_0 = arith.constant 0 : i32
    return %arg0, %c0_i32 : i32, i32
  }
  func.func @transform_1(%arg0: i32) -> (i32, i32, i32) {
    %c0_i32 = arith.constant 0 : i32
    %c0_i32_0 = arith.constant 0 : i32
    %c0_i32_1 = arith.constant 0 : i32
    return %arg0, %c0_i32, %c0_i32_0 : i32, i32, i32
  }
}

</mosaic_0001>

<llo_original>
// kernel: tpu_custom_call.1
$region0: #{tpu_custom_call.1}
  #allocation0 [shape = 'u32[]', space=smem, size = 0x4, offset = 0x4, fixed_abs, tag = 'smem constant byte address 0x4 - core index']
  #allocation1 [shape = 'u32[144,128]{1,0:T(1,128)}', space=vmem, size = 0x12000, scoped, tag = 'internal scratch']
  %s0 = inlined_call_operand.hbm [shape: f32[16,32], index: 0, kind: input, shape index: {}]
  %s1 = inlined_call_operand.hbm [shape: f32[1,1,1], index: 1, kind: output, shape index: {}]
  %s2 = sld [smem:[#allocation0]]
  $region18: #{tpu_custom_call.1} parent=0
    _
  %s4 = ssub.s32 1, %s2
  %s5 = scalar_select 0, %s4, %s2
  $region1: #{tpu_custom_call.1} parent=0
    #allocation2 [shape = 'u8[8192]{0}', space=vmem, size = 0x2000, scoped, tag = 'input window, operand 0, single buffered']
    #allocation3 [shape = 's32[1]{0}', space=sflag, size = 0x4, scoped, tag = 'scoped memory for tpu_custom_call.1']
    #allocation4 [shape = 's32[1]{0}', space=sflag, size = 0x4, scoped, tag = 'scoped memory for tpu_custom_call.1']
    #allocation5 [shape = 'u8[512]{0}', space=vmem, size = 0x400, scoped, tag = 'output window, operand 0, single buffered']
    %6 = vsyncpa [#allocation3], 0
    %7 = vsyncpa [#allocation4], 0
    // Predicated region
    $region2: #{tpu_custom_call.1} parent=1 // pred_check
      _
    $region3: #{tpu_custom_call.1} parent=1 // pred_check_branch
      %9 = sbr.rel (0) target = $region5
    $region4: #{tpu_custom_call.1} parent=1 // pred_region
      %s11 = ssub.s32 256, 256
      %12 = vsyncadd [#allocation3], %s11
      %s13 = sshll.u32 [#allocation2], 4
      %s14 = int_to_ptr.vmem [resolvable:$true] %s13
      %19 = dma.hbm_to_vmem [thread:$0]  %s0, 256, %s14, [#allocation3], 128, 128, 8
    $region5: #{tpu_custom_call.1} parent=1 // pred_fallthru
      _
    // Predicated region
    $region6: #{tpu_custom_call.1} parent=1 // pred_check
      _
    $region7: #{tpu_custom_call.1} parent=1 // pred_check_branch
      %21 = sbr.rel (0) target = $region9
    $region8: #{tpu_custom_call.1} parent=1 // pred_region
      %22 = dma.done [#allocation3], 256
    $region9: #{tpu_custom_call.1} parent=1 // pred_fallthru
      _
    %v23 = vld [vmem:[#allocation2] sm:$0xff]
    %v24 = vld [vmem:[#allocation2 + $0x8] sm:$0xff]
    %vm25 = vcmask 261120
    %v26 = vsel %vm25, %v23, -inf
    %27 = vmax.xlane.f32.xlu0 %v26
    %v28 = vpop.xlane.xlu0 %27
    %v29 = vsel %vm25, %v24, -inf
    %30 = vmax.xlane.f32.xlu0 %v29
    %v31 = vpop.xlane.xlu0 %30
    %v32 = vsub.f32 %v23, %v28
    %v33 = vsub.f32 %v24, %v31
    %v34 = vmul.f32 %v32, 1.442695
    %v35 = vpow.pop %v34
    %v36 = vmul.f32 %v33, 1.442695
    %v37 = vpow.pop %v36
    %v38 = vsel %vm25, %v35, 0.0
    %39 = vadd.xlane.f32.xlu0 %v38
    %v40 = vpop.xlane.xlu0 %39
    %v41 = vsel %vm25, %v37, 0.0
    %42 = vadd.xlane.f32.xlu0 %v41
    %v43 = vpop.xlane.xlu0 %42
    %v44 = vlog2.pop %v40
    %v45 = vmul.f32 %v44, 0.6931472
    %v46 = vlog2.pop %v43
    %v47 = vmul.f32 %v46, 0.6931472
    %v48 = vadd.f32 %v28, %v45
    %v49 = vadd.f32 %v31, %v47
    %v50 = vsub.f32 %v48, %v23
    %v51 = vsub.f32 %v49, %v24
    %54 = vrot.lane.b32.xlu0 %v50, 97
    %v55 = vpop.permute.xlu0 %54
    %56 = vrot.lane.b32.xlu0 %v51, 97
    %v57 = vpop.permute.xlu0 %56
    %vm60 = vcmask 7168
    %v61 = vsel %vm60, %v55, 0.0
    %v62 = vsel %vm60, %v57, 0.0
    %v63 = vadd.f32 %v61, %v62
    %64 = vadd.xlane.f32.xlu0 %v63
    %v65 = vpop.xlane.xlu0 %64
    %v66 = vrot.slane %v65, 4
    %v67 = vadd.f32 %v65, %v66
    %v68 = vrot.slane %v67, 2
    %v69 = vadd.f32 %v67, %v68
    %v70 = vrot.slane %v69, 1
    %v71 = vadd.f32 %v69, %v70
    %s72 = vtos %v71
    %v73 = vstv %s72
    %vm74 = vcmask 0
    %75 = vst.msk [vmem:[#allocation5] sm:$0x1] %vm74, %v73
    // Predicated region
    $region10: #{tpu_custom_call.1} parent=1 // pred_check
      _
    $region11: #{tpu_custom_call.1} parent=1 // pred_check_branch
      %77 = sbr.rel (0) target = $region13
    $region12: #{tpu_custom_call.1} parent=1 // pred_region
      %s79 = ssub.s32 16, 16
      %80 = vsyncadd [#allocation4], %s79
      %s82 = sshll.u32 [#allocation5], 4
      %s83 = int_to_ptr.vmem [resolvable:$true] %s82
      %85 = dma.vmem_to_hbm [thread:$0]  %s83, 16, %s1, [#allocation4]
    $region13: #{tpu_custom_call.1} parent=1 // pred_fallthru
      _
    // Predicated region
    $region14: #{tpu_custom_call.1} parent=1 // pred_check
      _
    $region15: #{tpu_custom_call.1} parent=1 // pred_check_branch
      %87 = sbr.rel (0) target = $region17
    $region16: #{tpu_custom_call.1} parent=1 // pred_region
      %88 = dma.done [#allocation4], 16
    $region17: #{tpu_custom_call.1} parent=1 // pred_fallthru
      _
    %89 = vsyncpa [#allocation3], 1
    %90 = vsyncpa [#allocation4], 1

</llo_original>
